<compile_context>
chip_gen: v6e
topology: v6e:2x2x1
jax: 0.10.0
libtpu: 0.0.40
codegen_flags: <defaults>
</compile_context>

<pallas_src>
import functools

import numpy as np
import jax
import jax.numpy as jnp
from jax.experimental import pallas as pl
from jax.experimental.pallas import tpu as pltpu


# --------------------------------------------------------------------------
# small helpers
# --------------------------------------------------------------------------
def _mxu_dot(a, b):
    """MXU matmul with bf16 operands and f32 accumulation.

    bf16 is the native MXU input rate on v5e/v6e/v7x; accumulation and all
    surrounding elementwise math stay f32 (v5e VPU/EUP have no native bf16).
    """
    return jnp.dot(a.astype(jnp.bfloat16), b.astype(jnp.bfloat16),
                   preferred_element_type=jnp.float32)


def _avg_pool_np(n):
    m = np.zeros((n // 2, n), np.float32)
    idx = np.arange(n // 2)
    m[idx, 2 * idx] = 0.5
    m[idx, 2 * idx + 1] = 0.5
    return m


@functools.lru_cache(maxsize=None)
def _row_pool(h_in):
    # (h_in//2, h_in): 2x average over sublane (row) pairs
    return jnp.asarray(_avg_pool_np(h_in))


@functools.lru_cache(maxsize=None)
def _col_pool_t_blockdiag(w_in, n_chan):
    # (C*w_in, C*(w_in//2)): block-diagonal, per-channel transposed column pool,
    # so ONE matmul pools every channel at once in the folded (H, C*W) layout.
    base = _avg_pool_np(w_in).T
    w_out = w_in // 2
    m = np.zeros((n_chan * w_in, n_chan * w_out), np.float32)
    for c in range(n_chan):
        m[c * w_in:(c + 1) * w_in, c * w_out:(c + 1) * w_out] = base
    return jnp.asarray(m)


def _avg_pool2x2(x):
    """Plain-XLA 2x2 average pool over (C, H, W); used only for the tiny tail mips."""
    c, h, w = x.shape
    return x.reshape(c, h // 2, 2, w // 2, 2).mean(axis=(2, 4))


# --------------------------------------------------------------------------
# Pallas kernel: SDF decoder MLP + per-tile SSE partials
# --------------------------------------------------------------------------
def _decoder_kernel(x_ref, w1_ref, b_ref, w2_ref, tgt_ref, out_ref, sse_ref, *, hid):
    """Fused 2-layer MLP + squared-error partials for one lane tile of N.

    Feature-major layout: x (Din, TN), w1 (HID, Din), w2 (Dout, HID), output
    (Dout, TN) -> N sits on lanes, so every MXU output and store is lane-dense.
    The per-tile SSE is written as a lane-dense (1, TN) row (no (1,1) masked
    store, no cross-tile accumulator); the mean is finished in XLA.
    NOTE: K = Din/HID (8/32) fills only a sliver of the MXU on every TPU
    generation, so further MXU-level tuning does not pay off at these widths.
    """
    b = b_ref[...]                       # (HID+Dout, 1): packed b1|b2, one DMA
    h = _mxu_dot(w1_ref[...], x_ref[...]) + b[:hid]
    h = jnp.maximum(h, 0.0)
    y = _mxu_dot(w2_ref[...], h) + b[hid:]
    out_ref[...] = y
    d = y - tgt_ref[...]
    sse_ref[...] = jnp.sum(d * d, axis=0, keepdims=True)


def decoder_apply(pts, w1, bias, w2, tgt):
    """Tiled-over-N decoder. Returns (features (Dout, N), per-lane SSE (1, N))."""
    din, n = pts.shape
    hid = w1.shape[0]
    dout = w2.shape[0]
    # Lane tile: >=512 lanes when possible (~85% of HBM roofline vs ~29% at 128),
    # preferring >=2 tiles so the "parallel" grid axis can split across v7x's two
    # TensorCores.  Per-tile operands stay a few hundred KB -> far below even
    # v7x's 32 MiB default scoped VMEM with double buffering.
    tn = n
    for cand in (2048, 1024, 512):
        if n > cand and n % cand == 0:
            tn = cand
            break
    n_tiles = n // tn
    kernel = functools.partial(_decoder_kernel, hid=hid)
    feats, sse = pl.pallas_call(
        kernel,
        out_shape=(jax.ShapeDtypeStruct((dout, n), jnp.float32),
                   jax.ShapeDtypeStruct((1, n), jnp.float32)),
        grid=(n_tiles,),
        in_specs=[pl.BlockSpec((din, tn), lambda i: (0, i)),
                  pl.BlockSpec((hid, din), lambda i: (0, 0)),
                  pl.BlockSpec((hid + dout, 1), lambda i: (0, 0)),
                  pl.BlockSpec((dout, hid), lambda i: (0, 0)),
                  pl.BlockSpec((dout, tn), lambda i: (0, i))],
        out_specs=(pl.BlockSpec((dout, tn), lambda i: (0, i)),
                   pl.BlockSpec((1, tn), lambda i: (0, i))),
        compiler_params=pltpu.CompilerParams(
            dimension_semantics=("parallel",)),
    )(pts, w1, bias, w2, tgt)
    return feats, sse


# --------------------------------------------------------------------------
# Pallas kernel: env-map mip pyramid (channel-folded) + optional dir transform
# --------------------------------------------------------------------------
def _make_light_kernel(n_kern, do_xfm):
    def kernel(*refs):
        env_ref = refs[0]
        pools = refs[1:1 + 2 * n_kern]
        idx = 1 + 2 * n_kern
        if do_xfm:
            dirs_ref = refs[idx]
            mv_ref = refs[idx + 1]
            idx += 2
        mip_refs = refs[idx:idx + n_kern]
        if do_xfm:
            dirs_out_ref = refs[idx + n_kern]

        # Channel-folded pooling: env is (H, C*W), so each level is exactly two
        # MXU matmuls (row pool, then block-diagonal column pool) for ALL
        # channels at once -> lane-dense intermediates and stores, no
        # per-channel loop, intermediates never leave VMEM.
        x = env_ref[...]
        for lvl in range(n_kern):
            t = _mxu_dot(pools[2 * lvl][...], x)
            x = _mxu_dot(t, pools[2 * lvl + 1][...])
            mip_refs[lvl][...] = x

        if do_xfm:
            # dirs are feature-major (D, M): lane-dense output of mv @ dirs.
            dirs_out_ref[...] = _mxu_dot(mv_ref[...], dirs_ref[...])
    return kernel


def light_update(env, dirs=None, mv=None):
    """Mip pyramid of `env` (+ optional mv @ dirs): the lane-dense levels run in
    ONE pallas_call; tiny tail levels (< 128 folded lanes) finish in plain XLA."""
    c, h0, w0 = env.shape
    sizes = []
    h, w = h0, w0
    while h > 4 and w > 4:
        h, w = h // 2, w // 2
        sizes.append((h, w))
    do_xfm = dirs is not None

    # levels kept inside the kernel: folded output width C*w stays >= 128 lanes
    n_kern = 0
    for (_, ww) in sizes:
        if c * ww >= 128:
            n_kern += 1
        else:
            break

    mips = []
    dirs_new = None
    if n_kern > 0:
        env_f = jnp.transpose(env, (1, 0, 2)).reshape(h0, c * w0)   # (H, C*W)
        pools = []
        ph, pw = h0, w0
        for (hh, ww) in sizes[:n_kern]:
            pools.append(_row_pool(ph))
            pools.append(_col_pool_t_blockdiag(pw, c))
            ph, pw = hh, ww

        operands = [env_f] + pools
        in_specs = [pl.BlockSpec(env_f.shape, lambda i: (0, 0))]
        in_specs += [pl.BlockSpec(p.shape, lambda i: (0, 0)) for p in pools]
        out_shapes = [jax.ShapeDtypeStruct((hh, c * ww), jnp.float32)
                      for (hh, ww) in sizes[:n_kern]]
        out_specs = [pl.BlockSpec((hh, c * ww), lambda i: (0, 0))
                     for (hh, ww) in sizes[:n_kern]]
        if do_xfm:
            d, m = dirs.shape
            operands += [dirs, mv]
            in_specs += [pl.BlockSpec((d, m), lambda i: (0, 0)),
                         pl.BlockSpec((d, d), lambda i: (0, 0))]
            out_shapes.append(jax.ShapeDtypeStruct((d, m), jnp.float32))
            out_specs.append(pl.BlockSpec((d, m), lambda i: (0, 0)))

        outs = pl.pallas_call(
            _make_light_kernel(n_kern, do_xfm),
            out_shape=tuple(out_shapes),
            grid=(1,),
            in_specs=in_specs,
            out_specs=tuple(out_specs),
            compiler_params=pltpu.CompilerParams(
                dimension_semantics=("arbitrary",)),
        )(*operands)

        for lvl, (hh, ww) in enumerate(sizes[:n_kern]):
            mips.append(jnp.transpose(outs[lvl].reshape(hh, c, ww), (1, 0, 2)))
        if do_xfm:
            dirs_new = outs[n_kern]
    elif do_xfm:
        dirs_new = jnp.dot(mv, dirs)

    # tail levels: negligible compute, lane width < 128 -> plain XLA (same jit)
    x = mips[-1] if mips else env
    for _ in sizes[n_kern:]:
        x = _avg_pool2x2(x)
        mips.append(x)
    return mips, dirs_new


# --------------------------------------------------------------------------
# Fused per-step programs: ONE host dispatch each (the pallas_calls plus the
# tiny XLA glue run inside a single jitted XLA program).
# --------------------------------------------------------------------------
@functools.partial(jax.jit, static_argnames=("camera_space_light",))
def _appearance_step(env, base_dirs, mv, pts, w1, bias, w2, tgt, *,
                     camera_space_light):
    if camera_space_light:
        mips, dirs_new = light_update(env, base_dirs, mv)
    else:
        mips, dirs_new = light_update(env)
    feats, sse = decoder_apply(pts, w1, bias, w2, tgt)
    loss = jnp.sum(sse) * (1.0 / (tgt.shape[0] * tgt.shape[1]))
    return mips, dirs_new, feats, loss


@jax.jit
def _decoder_step(pts, w1, bias, w2, tgt):
    feats, sse = decoder_apply(pts, w1, bias, w2, tgt)
    loss = jnp.sum(sse) * (1.0 / (tgt.shape[0] * tgt.shape[1]))
    return feats, loss


@jax.jit
def _pretrain_step(verts, w1, bias, w2):
    d_out = w2.shape[0]
    radii = jnp.asarray([1.0, 0.8, 0.6], jnp.float32)[:, None]
    sdf = jnp.linalg.norm(verts[:3, :] / radii, axis=0, keepdims=True) - 1.0
    tgt = jnp.concatenate(
        [sdf, jnp.zeros((d_out - 1, verts.shape[1]), jnp.float32)], axis=0)
    _, sse = decoder_apply(verts, w1, bias, w2, tgt)
    return jnp.sum(sse) * (1.0 / (tgt.shape[0] * tgt.shape[1]))


@jax.jit
def _light_step(env):
    mips, _ = light_update(env)
    return mips


# --------------------------------------------------------------------------
# Pure-JAX references for correctness self-checks
# --------------------------------------------------------------------------
def _decoder_ref(pts, w1, bias, w2, tgt):
    hid = w1.shape[0]
    h = jnp.maximum(jnp.dot(w1, pts) + bias[:hid], 0.0)
    y = jnp.dot(w2, h) + bias[hid:]
    return y, jnp.mean((y - tgt) ** 2)


# --------------------------------------------------------------------------
# Synthetic stand-ins for geometry / light / material (deterministic init)
# --------------------------------------------------------------------------
class Flags:
    def __init__(self, mode, coarse_iter=10, camera_space_light=True,
                 if_flip_the_normal=False, if_use_bump=False):
        self.mode = mode
        self.coarse_iter = coarse_iter
        self.camera_space_light = camera_space_light
        self.if_flip_the_normal = if_flip_the_normal
        self.if_use_bump = if_use_bump


class Light:
    def __init__(self, key, n_chan=8, h=32, w=32, n_dirs=256):
        k1, k2 = jax.random.split(key)
        self.env = jax.random.normal(k1, (n_chan, h, w), jnp.float32)
        # canonical directions kept feature-major (D, n_dirs); xfm applies the
        # CURRENT camera transform to this base set each call (non-compounding),
        # matching the reference where xfm sets the per-frame transform.
        self.base_dirs = jax.random.normal(k2, (8, n_dirs), jnp.float32)
        self.dirs = self.base_dirs
        self.mips = None

    def build_mips(self):
        self.mips = [self.env] + list(_light_step(self.env))

    def xfm(self, mv):
        self.dirs = jnp.dot(mv, self.base_dirs)

    def parameters(self):
        return [self.env]


class Material:
    def __init__(self, key):
        self.kd = jax.random.uniform(key, (16, 16, 8), jnp.float32)

    def parameters(self):
        return [self.kd]


class Decoder:
    def __init__(self, key, d_in=8, hidden=32, d_out=8):
        k1, k2 = jax.random.split(key)
        # feature-major weights: the kernel computes h = W1 @ x, y = W2 @ h with
        # the big N dim on lanes; b1/b2 are packed into one operand (one DMA).
        self.w1 = jax.random.normal(k1, (hidden, d_in), jnp.float32) * 0.1
        self.w2 = jax.random.normal(k2, (d_out, hidden), jnp.float32) * 0.1
        self.bias = jnp.zeros((hidden + d_out, 1), jnp.float32)

    def __call__(self, pts, tgt):
        return _decoder_step(pts, self.w1, self.bias, self.w2, tgt)

    def pre_train_ellipsoid(self, it, scene_and_vertices):
        verts = scene_and_vertices                 # (Din, N), rows 0..2 = xyz
        loss = _pretrain_step(verts, self.w1, self.bias, self.w2)
        return {'pretrain_loss': loss}


class Geometry:
    def __init__(self, key):
        self.decoder = Decoder(key)

    def parameters(self):
        d = self.decoder
        return [d.w1, d.bias, d.w2]

    def tick(self, glctx, target, lgt, mat, it, if_normal, guidance, mode,
             if_flip_the_normal, if_use_bump, *extra, precomputed=None):
        # TODO(synk): nvdiffrast rasterization (glctx) and diffusion guidance have
        # no Pallas equivalent; the differentiable hot path kept here is the SDF
        # decoder MLP + MSE reduction (Pallas kernel, pre-fused with the light
        # update when the Trainer runs the appearance path).
        if precomputed is None:
            sdf_feat, img_loss = self.decoder(target['pts'], target['sdf_gt'])
        else:
            sdf_feat, img_loss = precomputed
        result = {'sdf': sdf_feat,
                  'img_loss': img_loss,
                  'reg_loss': jnp.zeros((), jnp.float32)}
        if len(extra) == 2:   # (guidance_utils, feature_supervise) were passed
            result['features_supervise'] = {'semantic_features': sdf_feat,
                                            'structure_features': None}
        return result


# --------------------------------------------------------------------------
# Trainer: same control flow / semantics as the PyTorch module
# --------------------------------------------------------------------------
class Trainer:
    def __init__(self, glctx, geometry, lgt, mat, optimize_geometry,
                 optimize_light, FLAGS, guidance, guidance_utils):
        self.glctx = glctx
        self.geometry = geometry
        self.light = lgt
        self.material = mat
        self.optimize_geometry = optimize_geometry
        self.optimize_light = optimize_light
        self.FLAGS = FLAGS
        self.guidance = guidance
        self.if_flip_the_normal = FLAGS.if_flip_the_normal
        self.if_use_bump = FLAGS.if_use_bump
        self.guidance_utils = guidance_utils
        self.features_supervise = None
        if self.FLAGS.mode == 'appearance_modeling':
            if not self.optimize_light:
                self.light.build_mips()
        self.params = list(self.material.parameters())
        self.params += list(self.light.parameters()) if optimize_light else []
        self.geo_params = list(self.geometry.parameters()) if optimize_geometry else []

    def forward(self, target, it, if_normal, if_pretrain, scene_and_vertices):
        result_dict = None
        if self.FLAGS.mode == 'appearance_modeling':
            precomputed = None
            if self.optimize_light:
                # build_mips() (+ optional camera-space xfm) and the decoder hot
                # path of geometry.tick run in ONE jitted program: a single host
                # dispatch containing both pallas_calls.
                dec = self.geometry.decoder
                mv = target['mv'] if 'mv' in target else jnp.eye(
                    self.light.base_dirs.shape[0], dtype=jnp.float32)
                mips, dirs_new, feats, loss = _appearance_step(
                    self.light.env, self.light.base_dirs, mv,
                    target['pts'], dec.w1, dec.bias, dec.w2, target['sdf_gt'],
                    camera_space_light=self.FLAGS.camera_space_light)
                self.light.mips = [self.light.env] + list(mips)
                if self.FLAGS.camera_space_light:
                    self.light.dirs = dirs_new
                precomputed = (feats, loss)
            result_dict = self.geometry.tick(
                self.glctx, target, self.light, self.material, it, if_normal,
                self.guidance, self.FLAGS.mode, self.if_flip_the_normal,
                self.if_use_bump, precomputed=precomputed)
        elif self.FLAGS.mode == 'geometry_modeling':
            if if_pretrain:
                return self.geometry.decoder.pre_train_ellipsoid(it, scene_and_vertices)
            elif it < self.FLAGS.coarse_iter:
                result_dict = self.geometry.tick(
                    self.glctx, target, self.light, self.material, it, if_normal,
                    self.guidance, self.FLAGS.mode, self.if_flip_the_normal,
                    self.if_use_bump)
            elif it == self.FLAGS.coarse_iter:
                feature_supervise = {'semantic_features': None,
                                     'structure_features': None}
                result_dict = self.geometry.tick(
                    self.glctx, target, self.light, self.material, it, if_normal,
                    self.guidance, self.FLAGS.mode, self.if_flip_the_normal,
                    self.if_use_bump, self.guidance_utils, feature_supervise)
                self.features_supervise = result_dict.pop('features_supervise')
            else:
                result_dict = self.geometry.tick(
                    self.glctx, target, self.light, self.material, it, if_normal,
                    self.guidance, self.FLAGS.mode, self.if_flip_the_normal,
                    self.if_use_bump, self.guidance_utils, self.features_supervise)
        return result_dict

    __call__ = forward


# --------------------------------------------------------------------------
if __name__ == "__main__":
    key = jax.random.PRNGKey(0)
    k_env, k_mat, k_geo, k_pts, k_sdf, k_mv = jax.random.split(key, 6)

    N, DIN, DOUT = 1024, 8, 8
    # feature-major points / targets: (D, N) with rows 0..2 holding xyz
    pts = jnp.concatenate(
        [jax.random.normal(k_pts, (3, N), jnp.float32),
         jnp.zeros((DIN - 3, N), jnp.float32)], axis=0)
    sdf_gt = jax.random.normal(k_sdf, (DOUT, N), jnp.float32)
    mv = jnp.eye(8, dtype=jnp.float32) + 0.01 * jax.random.normal(k_mv, (8, 8), jnp.float32)
    target = {'pts': pts, 'sdf_gt': sdf_gt, 'mv': mv}

    # appearance_modeling path: fused (build_mips + camera-space light xfm +
    # decoder tick hot path) in one jitted dispatch
    flags = Flags(mode='appearance_modeling', coarse_iter=10,
                  camera_space_light=True)
    trainer = Trainer(glctx=None, geometry=Geometry(k_geo), lgt=Light(k_env),
                      mat=Material(k_mat), optimize_geometry=True,
                      optimize_light=True, FLAGS=flags, guidance=None,
                      guidance_utils=None)
    out = trainer(target, it=0, if_normal=False, if_pretrain=False,
                  scene_and_vertices=None)
    jax.block_until_ready(out['sdf'])
    jax.block_until_ready(out['img_loss'])
    jax.block_until_ready(trainer.light.mips[-1])
    jax.block_until_ready(trainer.light.dirs)

    # ---- self-checks against pure-JAX f32 references (loose tol: bf16 MXU) ----
    dec = trainer.geometry.decoder
    y_ref, loss_ref = _decoder_ref(pts, dec.w1, dec.bias, dec.w2, sdf_gt)
    np.testing.assert_allclose(np.asarray(out['sdf']), np.asarray(y_ref),
                               rtol=2e-2, atol=5e-2)
    np.testing.assert_allclose(float(out['img_loss']), float(loss_ref),
                               rtol=2e-2, atol=1e-2)

    env = trainer.light.env
    ref_mips = [env]
    x = env
    h, w = env.shape[1], env.shape[2]
    while h > 4 and w > 4:
        x = _avg_pool2x2(x)
        ref_mips.append(x)
        h, w = h // 2, w // 2
    assert len(trainer.light.mips) == len(ref_mips)
    for a, b in zip(trainer.light.mips, ref_mips):
        np.testing.assert_allclose(np.asarray(a), np.asarray(b),
                                   rtol=2e-2, atol=5e-2)
    np.testing.assert_allclose(np.asarray(trainer.light.dirs),
                               np.asarray(jnp.dot(mv, trainer.light.base_dirs)),
                               rtol=2e-2, atol=5e-2)

    # geometry_modeling pretrain branch (exercises the same decoder kernel)
    flags_g = Flags(mode='geometry_modeling', coarse_iter=10)
    trainer_g = Trainer(None, Geometry(k_geo), Light(k_env), Material(k_mat),
                        True, False, flags_g, None, None)
    pre = trainer_g(target, it=0, if_normal=False, if_pretrain=True,
                    scene_and_vertices=pts)
    jax.block_until_ready(pre['pretrain_loss'])

    print("KERNEL_OK")
</pallas_src>

<mosaic_0001>
module attributes {stable_mosaic.version = 11 : i64} {
  func.func @kernel(%arg0: i32, %arg1: memref<32x256xf32, #tpu.memory_space<vmem>>, %arg2: memref<16x32xf32, #tpu.memory_space<vmem>>, %arg3: memref<256x128xf32, #tpu.memory_space<vmem>>, %arg4: memref<8x256xf32, #tpu.memory_space<vmem>>, %arg5: memref<8x8xf32, #tpu.memory_space<vmem>>, %arg6: memref<16x128xf32, #tpu.memory_space<vmem>>, %arg7: memref<8x256xf32, #tpu.memory_space<vmem>>) attributes {dimension_semantics = [#tpu.dimension_semantics<arbitrary>], iteration_bounds = array<i64: 1>, scalar_prefetch = 0 : i64, scratch_operands = 0 : i64, tpu.core_type = #tpu.core_type<tc>, window_params = [{pipeline_mode = #tpu.pipeline_mode<synchronous>, transform_indices = @transform_0, window_bounds = array<i64: 32, 256>}, {pipeline_mode = #tpu.pipeline_mode<synchronous>, transform_indices = @transform_1, window_bounds = array<i64: 16, 32>}, {pipeline_mode = #tpu.pipeline_mode<synchronous>, transform_indices = @transform_2, window_bounds = array<i64: 256, 128>}, {pipeline_mode = #tpu.pipeline_mode<synchronous>, transform_indices = @transform_3, window_bounds = array<i64: 8, 256>}, {pipeline_mode = #tpu.pipeline_mode<synchronous>, transform_indices = @transform_4, window_bounds = array<i64: 8, 8>}, {pipeline_mode = #tpu.pipeline_mode<synchronous>, transform_indices = @transform_5, window_bounds = array<i64: 16, 128>}, {pipeline_mode = #tpu.pipeline_mode<synchronous>, transform_indices = @transform_6, window_bounds = array<i64: 8, 256>}]} {
    %c0 = arith.constant 0 : index
    %c0_0 = arith.constant 0 : index
    %0 = vector.load %arg1[%c0, %c0_0] : memref<32x256xf32, #tpu.memory_space<vmem>>, vector<32x256xf32>
    %c0_1 = arith.constant 0 : index
    %c0_2 = arith.constant 0 : index
    %1 = vector.load %arg2[%c0_1, %c0_2] : memref<16x32xf32, #tpu.memory_space<vmem>>, vector<16x32xf32>
    %2 = arith.truncf %1 : vector<16x32xf32> to vector<16x32xbf16>
    %3 = arith.truncf %0 : vector<32x256xf32> to vector<32x256xbf16>
    %cst = arith.constant dense<0.000000e+00> : vector<16x256xf32>
    %4 = tpu.matmul %2, %3, %cst {dimension_numbers = #tpu.dot_dimension_numbers<[1], [0], [0], [1], [0, 0, 1, 1], [], []>} : vector<16x32xbf16>, vector<32x256xbf16>, vector<16x256xf32> -> vector<16x256xf32>
    %c0_3 = arith.constant 0 : index
    %c0_4 = arith.constant 0 : index
    %5 = vector.load %arg3[%c0_3, %c0_4] : memref<256x128xf32, #tpu.memory_space<vmem>>, vector<256x128xf32>
    %6 = arith.truncf %4 : vector<16x256xf32> to vector<16x256xbf16>
    %7 = arith.truncf %5 : vector<256x128xf32> to vector<256x128xbf16>
    %cst_5 = arith.constant dense<0.000000e+00> : vector<16x128xf32>
    %8 = tpu.matmul %6, %7, %cst_5 {dimension_numbers = #tpu.dot_dimension_numbers<[1], [0], [0], [1], [0, 0, 1, 1], [], []>} : vector<16x256xbf16>, vector<256x128xbf16>, vector<16x128xf32> -> vector<16x128xf32>
    %c0_6 = arith.constant 0 : index
    %c0_7 = arith.constant 0 : index
    %9 = vector.load %arg6[%c0_6, %c0_7] : memref<16x128xf32, #tpu.memory_space<vmem>>, vector<16x128xf32>
    tpu.vector_store %arg6[%c0_6, %c0_7], %8 {strides = array<i32>} : memref<16x128xf32, #tpu.memory_space<vmem>>, vector<16x128xf32>,
    %c0_8 = arith.constant 0 : index
    %c0_9 = arith.constant 0 : index
    %10 = vector.load %arg5[%c0_8, %c0_9] : memref<8x8xf32, #tpu.memory_space<vmem>>, vector<8x8xf32>
    %c0_10 = arith.constant 0 : index
    %c0_11 = arith.constant 0 : index
    %11 = vector.load %arg4[%c0_10, %c0_11] : memref<8x256xf32, #tpu.memory_space<vmem>>, vector<8x256xf32>
    %12 = arith.truncf %10 : vector<8x8xf32> to vector<8x8xbf16>
    %13 = arith.truncf %11 : vector<8x256xf32> to vector<8x256xbf16>
    %cst_12 = arith.constant dense<0.000000e+00> : vector<8x256xf32>
    %14 = tpu.matmul %12, %13, %cst_12 {dimension_numbers = #tpu.dot_dimension_numbers<[1], [0], [0], [1], [0, 0, 1, 1], [], []>} : vector<8x8xbf16>, vector<8x256xbf16>, vector<8x256xf32> -> vector<8x256xf32>
    %c0_13 = arith.constant 0 : index
    %c0_14 = arith.constant 0 : index
    %15 = vector.load %arg7[%c0_13, %c0_14] : memref<8x256xf32, #tpu.memory_space<vmem>>, vector<8x256xf32>
    tpu.vector_store %arg7[%c0_13, %c0_14], %14 {strides = array<i32>} : memref<8x256xf32, #tpu.memory_space<vmem>>, vector<8x256xf32>,
    return
  }
  func.func @transform_0(%arg0: i32) -> (i32, i32) {
    %c0_i32 = arith.constant 0 : i32
    %c0_i32_0 = arith.constant 0 : i32
    %c0_i32_1 = arith.constant 0 : i32
    return %c0_i32, %c0_i32_0 : i32, i32
  }
  func.func @transform_1(%arg0: i32) -> (i32, i32) {
    %c0_i32 = arith.constant 0 : i32
    %c0_i32_0 = arith.constant 0 : i32
    %c0_i32_1 = arith.constant 0 : i32
    return %c0_i32, %c0_i32_0 : i32, i32
  }
  func.func @transform_2(%arg0: i32) -> (i32, i32) {
    %c0_i32 = arith.constant 0 : i32
    %c0_i32_0 = arith.constant 0 : i32
    %c0_i32_1 = arith.constant 0 : i32
    return %c0_i32, %c0_i32_0 : i32, i32
  }
  func.func @transform_3(%arg0: i32) -> (i32, i32) {
    %c0_i32 = arith.constant 0 : i32
    %c0_i32_0 = arith.constant 0 : i32
    %c0_i32_1 = arith.constant 0 : i32
    return %c0_i32, %c0_i32_0 : i32, i32
  }
  func.func @transform_4(%arg0: i32) -> (i32, i32) {
    %c0_i32 = arith.constant 0 : i32
    %c0_i32_0 = arith.constant 0 : i32
    %c0_i32_1 = arith.constant 0 : i32
    return %c0_i32, %c0_i32_0 : i32, i32
  }
  func.func @transform_5(%arg0: i32) -> (i32, i32) {
    %c0_i32 = arith.constant 0 : i32
    %c0_i32_0 = arith.constant 0 : i32
    %c0_i32_1 = arith.constant 0 : i32
    return %c0_i32, %c0_i32_0 : i32, i32
  }
  func.func @transform_6(%arg0: i32) -> (i32, i32) {
    %c0_i32 = arith.constant 0 : i32
    %c0_i32_0 = arith.constant 0 : i32
    %c0_i32_1 = arith.constant 0 : i32
    return %c0_i32, %c0_i32_0 : i32, i32
  }
}

module attributes {stable_mosaic.version = 11 : i64} {
  func.func @_decoder_kernel(%arg0: i32, %arg1: memref<8x512xf32, #tpu.memory_space<vmem>>, %arg2: memref<32x8xf32, #tpu.memory_space<vmem>>, %arg3: memref<40x1xf32, #tpu.memory_space<vmem>>, %arg4: memref<8x32xf32, #tpu.memory_space<vmem>>, %arg5: memref<8x512xf32, #tpu.memory_space<vmem>>, %arg6: memref<8x512xf32, #tpu.memory_space<vmem>>, %arg7: memref<1x512xf32, #tpu.memory_space<vmem>>) attributes {dimension_semantics = [#tpu.dimension_semantics<parallel>], iteration_bounds = array<i64: 2>, scalar_prefetch = 0 : i64, scratch_operands = 0 : i64, tpu.core_type = #tpu.core_type<tc>, window_params = [{transform_indices = @transform_0, window_bounds = array<i64: 8, 512>}, {pipeline_mode = #tpu.pipeline_mode<synchronous>, transform_indices = @transform_1, window_bounds = array<i64: 32, 8>}, {pipeline_mode = #tpu.pipeline_mode<synchronous>, transform_indices = @transform_2, window_bounds = array<i64: 40, 1>}, {pipeline_mode = #tpu.pipeline_mode<synchronous>, transform_indices = @transform_3, window_bounds = array<i64: 8, 32>}, {transform_indices = @transform_4, window_bounds = array<i64: 8, 512>}, {transform_indices = @transform_5, window_bounds = array<i64: 8, 512>}, {transform_indices = @transform_6, window_bounds = array<i64: 1, 512>}]} {
    %c0 = arith.constant 0 : index
    %c0_0 = arith.constant 0 : index
    %0 = vector.load %arg3[%c0, %c0_0] : memref<40x1xf32, #tpu.memory_space<vmem>>, vector<40x1xf32>
    %c0_1 = arith.constant 0 : index
    %c0_2 = arith.constant 0 : index
    %1 = vector.load %arg2[%c0_1, %c0_2] : memref<32x8xf32, #tpu.memory_space<vmem>>, vector<32x8xf32>
    %c0_3 = arith.constant 0 : index
    %c0_4 = arith.constant 0 : index
    %2 = vector.load %arg1[%c0_3, %c0_4] : memref<8x512xf32, #tpu.memory_space<vmem>>, vector<8x512xf32>
    %3 = arith.truncf %1 : vector<32x8xf32> to vector<32x8xbf16>
    %4 = arith.truncf %2 : vector<8x512xf32> to vector<8x512xbf16>
    %cst = arith.constant dense<0.000000e+00> : vector<32x512xf32>
    %5 = tpu.matmul %3, %4, %cst {dimension_numbers = #tpu.dot_dimension_numbers<[1], [0], [0], [1], [0, 0, 1, 1], [], []>} : vector<32x8xbf16>, vector<8x512xbf16>, vector<32x512xf32> -> vector<32x512xf32>
    %6 = vector.extract_strided_slice %0 {offsets = [0, 0], sizes = [32, 1], strides = [1, 1]} : vector<40x1xf32> to vector<32x1xf32>
    %7 = vector.broadcast %6 : vector<32x1xf32> to vector<32x512xf32>
    %8 = arith.addf %5, %7 : vector<32x512xf32>
    %cst_5 = arith.constant 0.000000e+00 : f32
    %9 = vector.broadcast %cst_5 : f32 to vector<32x512xf32>
    %10 = arith.maximumf %8, %9 : vector<32x512xf32>
    %c0_6 = arith.constant 0 : index
    %c0_7 = arith.constant 0 : index
    %11 = vector.load %arg4[%c0_6, %c0_7] : memref<8x32xf32, #tpu.memory_space<vmem>>, vector<8x32xf32>
    %12 = arith.truncf %11 : vector<8x32xf32> to vector<8x32xbf16>
    %13 = arith.truncf %10 : vector<32x512xf32> to vector<32x512xbf16>
    %cst_8 = arith.constant dense<0.000000e+00> : vector<8x512xf32>
    %14 = tpu.matmul %12, %13, %cst_8 {dimension_numbers = #tpu.dot_dimension_numbers<[1], [0], [0], [1], [0, 0, 1, 1], [], []>} : vector<8x32xbf16>, vector<32x512xbf16>, vector<8x512xf32> -> vector<8x512xf32>
    %15 = vector.extract_strided_slice %0 {offsets = [32, 0], sizes = [8, 1], strides = [1, 1]} : vector<40x1xf32> to vector<8x1xf32>
    %16 = vector.broadcast %15 : vector<8x1xf32> to vector<8x512xf32>
    %17 = arith.addf %14, %16 : vector<8x512xf32>
    %c0_9 = arith.constant 0 : index
    %c0_10 = arith.constant 0 : index
    %18 = vector.load %arg6[%c0_9, %c0_10] : memref<8x512xf32, #tpu.memory_space<vmem>>, vector<8x512xf32>
    tpu.vector_store %arg6[%c0_9, %c0_10], %17 {strides = array<i32>} : memref<8x512xf32, #tpu.memory_space<vmem>>, vector<8x512xf32>,
    %c0_11 = arith.constant 0 : index
    %c0_12 = arith.constant 0 : index
    %19 = vector.load %arg5[%c0_11, %c0_12] : memref<8x512xf32, #tpu.memory_space<vmem>>, vector<8x512xf32>
    %20 = arith.subf %17, %19 : vector<8x512xf32>
    %21 = arith.mulf %20, %20 : vector<8x512xf32>
    %cst_13 = arith.constant dense<0.000000e+00> : vector<512xf32>
    %22 = vector.multi_reduction <add>, %21, %cst_13 [0] : vector<8x512xf32> to vector<512xf32>
    %23 = vector.shape_cast %22 : vector<512xf32> to vector<1x512xf32>
    %c0_14 = arith.constant 0 : index
    %c0_15 = arith.constant 0 : index
    %24 = vector.load %arg7[%c0_14, %c0_15] : memref<1x512xf32, #tpu.memory_space<vmem>>, vector<1x512xf32>
    tpu.vector_store %arg7[%c0_14, %c0_15], %23 {strides = array<i32>} : memref<1x512xf32, #tpu.memory_space<vmem>>, vector<1x512xf32>,
    return
  }
  func.func @transform_0(%arg0: i32) -> (i32, i32) {
    %c0_i32 = arith.constant 0 : i32
    %c0_i32_0 = arith.constant 0 : i32
    return %c0_i32, %arg0 : i32, i32
  }
  func.func @transform_1(%arg0: i32) -> (i32, i32) {
    %c0_i32 = arith.constant 0 : i32
    %c0_i32_0 = arith.constant 0 : i32
    %c0_i32_1 = arith.constant 0 : i32
    return %c0_i32, %c0_i32_0 : i32, i32
  }
  func.func @transform_2(%arg0: i32) -> (i32, i32) {
    %c0_i32 = arith.constant 0 : i32
    %c0_i32_0 = arith.constant 0 : i32
    %c0_i32_1 = arith.constant 0 : i32
    return %c0_i32, %c0_i32_0 : i32, i32
  }
  func.func @transform_3(%arg0: i32) -> (i32, i32) {
    %c0_i32 = arith.constant 0 : i32
    %c0_i32_0 = arith.constant 0 : i32
    %c0_i32_1 = arith.constant 0 : i32
    return %c0_i32, %c0_i32_0 : i32, i32
  }
  func.func @transform_4(%arg0: i32) -> (i32, i32) {
    %c0_i32 = arith.constant 0 : i32
    %c0_i32_0 = arith.constant 0 : i32
    return %c0_i32, %arg0 : i32, i32
  }
  func.func @transform_5(%arg0: i32) -> (i32, i32) {
    %c0_i32 = arith.constant 0 : i32
    %c0_i32_0 = arith.constant 0 : i32
    return %c0_i32, %arg0 : i32, i32
  }
  func.func @transform_6(%arg0: i32) -> (i32, i32) {
    %c0_i32 = arith.constant 0 : i32
    %c0_i32_0 = arith.constant 0 : i32
    return %c0_i32, %arg0 : i32, i32
  }
}

</mosaic_0001>

<llo_original>
// kernel: _appearance_step.2
$region0: #{_appearance_step.2}
  #allocation0 [shape = 'u32[]', space=smem, size = 0x4, offset = 0x4, fixed_abs, tag = 'smem constant byte address 0x4 - core index']
  #allocation1 [shape = 'u32[144,128]{1,0:T(1,128)}', space=vmem, size = 0x12000, scoped, tag = 'internal scratch']
  %s0 = inlined_call_operand.vmem [shape: f32[32,256], index: 0, kind: input, shape index: {}]
  %s1 = inlined_call_operand.vmem [shape: f32[16,32], index: 1, kind: input, shape index: {}]
  %s2 = inlined_call_operand.vmem [shape: f32[256,128], index: 2, kind: input, shape index: {}]
  %s3 = inlined_call_operand.vmem [shape: f32[8,256], index: 3, kind: input, shape index: {}]
  %s4 = inlined_call_operand.vmem [shape: f32[8,8], index: 4, kind: input, shape index: {}]
  %s5 = inlined_call_operand.vmem [shape: f32[16,128], index: 5, kind: output, shape index: {0}]
  %s6 = inlined_call_operand.hbm [shape: f32[8,256], index: 6, kind: output, shape index: {1}]
  %7 = xla_tuple %s5, %s6
  %s8 = sld [smem:[#allocation0]]
  $region38: #{_appearance_step.2} parent=0
    _
  %s10 = ssub.s32 1, %s8
  %s11 = scalar_select 0, %s10, %s8
  $region1: #{_appearance_step.2} parent=0
    #allocation2 [shape = 'u8[8192]{0}', space=vmem, size = 0x2000, scoped, tag = 'output window, operand 1, single buffered']
    #allocation3 [shape = 's32[1]{0}', space=sflag, size = 0x4, scoped, tag = 'scoped memory for _appearance_step.2']
    %12 = vsyncpa [#allocation3], 0
    // Predicated region
    $region2: #{_appearance_step.2} parent=1 // pred_check
      _
    $region3: #{_appearance_step.2} parent=1 // pred_check_branch
      %14 = sbr.rel (0) target = $region5
    $region4: #{_appearance_step.2} parent=1 // pred_region
      _
    $region5: #{_appearance_step.2} parent=1 // pred_fallthru
      _
    // Predicated region
    $region6: #{_appearance_step.2} parent=1 // pred_check
      _
    $region7: #{_appearance_step.2} parent=1 // pred_check_branch
      %16 = sbr.rel (0) target = $region9
    $region8: #{_appearance_step.2} parent=1 // pred_region
      _
    $region9: #{_appearance_step.2} parent=1 // pred_fallthru
      _
    // Predicated region
    $region10: #{_appearance_step.2} parent=1 // pred_check
      _
    $region11: #{_appearance_step.2} parent=1 // pred_check_branch
      %18 = sbr.rel (0) target = $region13
    $region12: #{_appearance_step.2} parent=1 // pred_region
      _
    $region13: #{_appearance_step.2} parent=1 // pred_fallthru
      _
    // Predicated region
    $region14: #{_appearance_step.2} parent=1 // pred_check
      _
    $region15: #{_appearance_step.2} parent=1 // pred_check_branch
      %20 = sbr.rel (0) target = $region17
    $region16: #{_appearance_step.2} parent=1 // pred_region
      _
    $region17: #{_appearance_step.2} parent=1 // pred_fallthru
      _
    // Predicated region
    $region18: #{_appearance_step.2} parent=1 // pred_check
      _
    $region19: #{_appearance_step.2} parent=1 // pred_check_branch
      %22 = sbr.rel (0) target = $region21
    $region20: #{_appearance_step.2} parent=1 // pred_region
      _
    $region21: #{_appearance_step.2} parent=1 // pred_fallthru
      _
    %v24 = vld [vmem:[%s0] sm:$0xff]
    %v25 = vld [vmem:[%s0 + $0x8] sm:$0xff]
    %v26 = vld [vmem:[%s0 + $0x10] sm:$0xff]
    %v27 = vld [vmem:[%s0 + $0x18] sm:$0xff]
    %v28 = vld [vmem:[%s0 + $0x20] sm:$0xff]
    %v29 = vld [vmem:[%s0 + $0x28] sm:$0xff]
    %v30 = vld [vmem:[%s0 + $0x30] sm:$0xff]
    %v31 = vld [vmem:[%s0 + $0x38] sm:$0xff]
    %v32 = vld [vmem:[%s1] sm:$0xff]
    %v33 = vld [vmem:[%s1 + $0x8] sm:$0xff]
    %v34 = vpack.c.bf16 %v33, %v32
    %v35 = vpack.c.bf16 %v26, %v24
    %v36 = vpack.c.bf16 %v27, %v25
    %v37 = vpack.c.bf16 %v30, %v28
    %v38 = vpack.c.bf16 %v31, %v29
    %vm39 = vcmask 261120
    %v41 = vsel %vm39, %v34, 0
    %43 = vmatprep.subr.bf16.mxu0 0
    %44 = vmatpush1.bf16.msra.mxu0 0
    %45 = vmatprep.subr.bf16.mxu0 0
    %46 = vmatpush1.bf16.msra.mxu0 0
    %47 = vmatprep.subr.bf16.mxu0 0
    %48 = vmatpush1.bf16.msra.mxu0 0
    %49 = vmatprep.subr.bf16.mxu0 0
    %50 = vmatpush1.bf16.msra.mxu0 0
    %51 = vmatprep.subr.bf16.mxu0 0
    %52 = vmatpush1.bf16.msra.mxu0 0
    %53 = vmatprep.subr.bf16.mxu0 0
    %54 = vmatpush1.bf16.msra.mxu0 0
    %55 = vmatprep.subr.bf16.mxu0 %v38
    %56 = vmatpush1.bf16.msra.mxu0 %v37
    %57 = vmatprep.subr.bf16.mxu0 %v36
    %58 = vmatpush1.bf16.msra.mxu0 %v35
    %59 = vmatprep.subr.bf16.mxu0 0
    %60 = vmatpush2.bf16.msra.mxu0 0
    %61 = vmatprep.subr.bf16.mxu0 0
    %62 = vmatpush2.bf16.msra.mxu0 0
    %63 = vmatprep.subr.bf16.mxu0 0
    %64 = vmatpush2.bf16.msra.mxu0 0
    %65 = vmatprep.subr.bf16.mxu0 0
    %66 = vmatpush2.bf16.msra.mxu0 0
    %67 = vmatprep.subr.bf16.mxu0 0
    %68 = vmatpush2.bf16.msra.mxu0 0
    %69 = vmatprep.subr.bf16.mxu0 0
    %70 = vmatpush2.bf16.msra.mxu0 0
    %71 = vmatprep.subr.bf16.mxu0 0
    %72 = vmatpush2.bf16.msra.mxu0 0
    %73 = vmatprep.subr.bf16.mxu0 0
    %74 = vmatpush2.bf16.msra.mxu0 0
    %75 = vmatprep.mubr.bf16.mxu0 0
    %76 = vmatmul.mubr.bf16.gmra.mxu0 %v41
    %v77 = vpop.f32.mrf.mxu0
    %v78 = vadd.f32 0.0, %v77
    %v79 = vpop.f32.mrf.mxu0
    %v80 = vadd.f32 0.0, %v79
    %v81 = vpop.f32.mrf.mxu0
    %v82 = vadd.f32 0.0, %v81
    %v83 = vpop.f32.mrf.mxu0
    %v84 = vadd.f32 0.0, %v83
    %85 = vdwg.mxu0
    %v86 = vld [vmem:[%s2] sm:$0xff]
    %v87 = vld [vmem:[%s2 + $0x8] sm:$0xff]
    %v88 = vld [vmem:[%s2 + $0x10] sm:$0xff]
    %v89 = vld [vmem:[%s2 + $0x18] sm:$0xff]
    %v90 = vld [vmem:[%s2 + $0x20] sm:$0xff]
    %v91 = vld [vmem:[%s2 + $0x28] sm:$0xff]
    %v92 = vld [vmem:[%s2 + $0x30] sm:$0xff]
    %v93 = vld [vmem:[%s2 + $0x38] sm:$0xff]
    %v94 = vld [vmem:[%s2 + $0x40] sm:$0xff]
    %v95 = vld [vmem:[%s2 + $0x48] sm:$0xff]
    %v96 = vld [vmem:[%s2 + $0x50] sm:$0xff]
    %v97 = vld [vmem:[%s2 + $0x58] sm:$0xff]
    %v98 = vld [vmem:[%s2 + $0x60] sm:$0xff]
    %v99 = vld [vmem:[%s2 + $0x68] sm:$0xff]
    %v100 = vld [vmem:[%s2 + $0x70] sm:$0xff]
    %v101 = vld [vmem:[%s2 + $0x78] sm:$0xff]
    %v102 = vld [vmem:[%s2 + $0x80] sm:$0xff]
    %v103 = vld [vmem:[%s2 + $0x88] sm:$0xff]
    %v104 = vld [vmem:[%s2 + $0x90] sm:$0xff]
    %v105 = vld [vmem:[%s2 + $0x98] sm:$0xff]
    %v106 = vld [vmem:[%s2 + $0xa0] sm:$0xff]
    %v107 = vld [vmem:[%s2 + $0xa8] sm:$0xff]
    %v108 = vld [vmem:[%s2 + $0xb0] sm:$0xff]
    %v109 = vld [vmem:[%s2 + $0xb8] sm:$0xff]
    %v110 = vld [vmem:[%s2 + $0xc0] sm:$0xff]
    %v111 = vld [vmem:[%s2 + $0xc8] sm:$0xff]
    %v112 = vld [vmem:[%s2 + $0xd0] sm:$0xff]
    %v113 = vld [vmem:[%s2 + $0xd8] sm:$0xff]
    %v114 = vld [vmem:[%s2 + $0xe0] sm:$0xff]
    %v115 = vld [vmem:[%s2 + $0xe8] sm:$0xff]
    %v116 = vld [vmem:[%s2 + $0xf0] sm:$0xff]
    %v117 = vld [vmem:[%s2 + $0xf8] sm:$0xff]
    %v118 = vpack.c.bf16 %v82, %v78
    %v119 = vpack.c.bf16 %v84, %v80
    %v120 = vpack.c.bf16 %v87, %v86
    %v121 = vpack.c.bf16 %v89, %v88
    %v122 = vpack.c.bf16 %v91, %v90
    %v123 = vpack.c.bf16 %v93, %v92
    %v124 = vpack.c.bf16 %v95, %v94
    %v125 = vpack.c.bf16 %v97, %v96
    %v126 = vpack.c.bf16 %v99, %v98
    %v127 = vpack.c.bf16 %v101, %v100
    %v128 = vpack.c.bf16 %v103, %v102
    %v129 = vpack.c.bf16 %v105, %v104
    %v130 = vpack.c.bf16 %v107, %v106
    %v131 = vpack.c.bf16 %v109, %v108
    %v132 = vpack.c.bf16 %v111, %v110
    %v133 = vpack.c.bf16 %v113, %v112
    %v134 = vpack.c.bf16 %v115, %v114
    %v135 = vpack.c.bf16 %v117, %v116
    %136 = vmatprep.subr.bf16.mxu0 0
    %137 = vmatpush1.bf16.msra.mxu0 %v127
    %138 = vmatprep.subr.bf16.mxu0 0
    %139 = vmatpush1.bf16.msra.mxu0 %v126
    %140 = vmatprep.subr.bf16.mxu0 0
    %141 = vmatpush1.bf16.msra.mxu0 %v125
    %142 = vmatprep.subr.bf16.mxu0 0
    %143 = vmatpush1.bf16.msra.mxu0 %v124
    %144 = vmatprep.subr.bf16.mxu0 0
    %145 = vmatpush1.bf16.msra.mxu0 %v123
    %146 = vmatprep.subr.bf16.mxu0 0
    %147 = vmatpush1.bf16.msra.mxu0 %v122
    %148 = vmatprep.subr.bf16.mxu0 0
    %149 = vmatpush1.bf16.msra.mxu0 %v121
    %150 = vmatprep.subr.bf16.mxu0 0
    %151 = vmatpush1.bf16.msra.mxu0 %v120
    %152 = vmatprep.subr.bf16.mxu0 0
    %153 = vmatpush2.bf16.msra.mxu0 %v135
    %154 = vmatprep.subr.bf16.mxu0 0
    %155 = vmatpush2.bf16.msra.mxu0 %v134
    %156 = vmatprep.subr.bf16.mxu0 0
    %157 = vmatpush2.bf16.msra.mxu0 %v133
    %158 = vmatprep.subr.bf16.mxu0 0
    %159 = vmatpush2.bf16.msra.mxu0 %v132
    %160 = vmatprep.subr.bf16.mxu0 0
    %161 = vmatpush2.bf16.msra.mxu0 %v131
    %162 = vmatprep.subr.bf16.mxu0 0
    %163 = vmatpush2.bf16.msra.mxu0 %v130
    %164 = vmatprep.subr.bf16.mxu0 0
    %165 = vmatpush2.bf16.msra.mxu0 %v129
    %166 = vmatprep.subr.bf16.mxu0 0
    %167 = vmatpush2.bf16.msra.mxu0 %v128
    %168 = vmatprep.mubr.bf16.mxu0 %v119
    %169 = vmatmul.mubr.bf16.gmra.mxu0 %v118
    %v170 = vpop.f32.mrf.mxu0
    %v171 = vadd.f32 0.0, %v170
    %v172 = vpop.f32.mrf.mxu0
    %v173 = vpop.f32.mrf.mxu0
    %v174 = vadd.f32 0.0, %v173
    %v175 = vpop.f32.mrf.mxu0
    %176 = vdwg.mxu0
    %177 = vst [vmem:[%s5] sm:$0xff] %v171
    %178 = vst [vmem:[%s5 + $0x8] sm:$0xff] %v174
    %v179 = vld [vmem:[%s4] sm:$0xff]
    %v180 = vld [vmem:[%s3] sm:$0xff]
    %v181 = vld [vmem:[%s3 + $0x8] sm:$0xff]
    %v182 = vpack.c.bf16 %v179, %v179
    %v183 = vpack.c.bf16 %v180, %v180
    %v184 = vpack.c.bf16 %v181, %v181
    %vm185 = vcmask 64512
    %v187 = vsel %vm185, %v182, 0
    %vm189 = vcmask 1043456
    %v191 = vsel %vm189, %v183, 0
    %v194 = vsel %vm189, %v184, 0
    %196 = vmatprep.subr.bf16.mxu0 0
    %197 = vmatpush1.bf16.msra.mxu0 0
    %198 = vmatprep.subr.bf16.mxu0 0
    %199 = vmatpush1.bf16.msra.mxu0 0
    %200 = vmatprep.subr.bf16.mxu0 0
    %201 = vmatpush1.bf16.msra.mxu0 0
    %202 = vmatprep.subr.bf16.mxu0 0
    %203 = vmatpush1.bf16.msra.mxu0 0
    %204 = vmatprep.subr.bf16.mxu0 0
    %205 = vmatpush1.bf16.msra.mxu0 0
    %206 = vmatprep.subr.bf16.mxu0 0
    %207 = vmatpush1.bf16.msra.mxu0 0
    %208 = vmatprep.subr.bf16.mxu0 0
    %209 = vmatpush1.bf16.msra.mxu0 0
    %210 = vmatprep.subr.bf16.mxu0 %v194
    %211 = vmatpush1.bf16.msra.mxu0 %v191
    %212 = vmatprep.subr.bf16.mxu0 0
    %213 = vmatpush2.bf16.msra.mxu0 0
    %214 = vmatprep.subr.bf16.mxu0 0
    %215 = vmatpush2.bf16.msra.mxu0 0
    %216 = vmatprep.subr.bf16.mxu0 0
    %217 = vmatpush2.bf16.msra.mxu0 0
    %218 = vmatprep.subr.bf16.mxu0 0
    %219 = vmatpush2.bf16.msra.mxu0 0
    %220 = vmatprep.subr.bf16.mxu0 0
    %221 = vmatpush2.bf16.msra.mxu0 0
    %222 = vmatprep.subr.bf16.mxu0 0
    %223 = vmatpush2.bf16.msra.mxu0 0
    %224 = vmatprep.subr.bf16.mxu0 0
    %225 = vmatpush2.bf16.msra.mxu0 0
    %226 = vmatprep.subr.bf16.mxu0 0
    %227 = vmatpush2.bf16.msra.mxu0 0
    %228 = vmatprep.mubr.bf16.mxu0 0
    %229 = vmatmul.mubr.bf16.gmra.mxu0 %v187
    %v230 = vpop.f32.mrf.mxu0
    %v231 = vadd.f32 0.0, %v230
    %v232 = vpop.f32.mrf.mxu0
    %v233 = vadd.f32 0.0, %v232
    %v234 = vpop.f32.mrf.mxu0
    %v235 = vpop.f32.mrf.mxu0
    %236 = vdwg.mxu0
    %237 = vst [vmem:[#allocation2] sm:$0xff] %v231
    %238 = vst [vmem:[#allocation2 + $0x8] sm:$0xff] %v233
    // Predicated region
    $region22: #{_appearance_step.2} parent=1 // pred_check
      _
    $region23: #{_appearance_step.2} parent=1 // pred_check_branch
      %240 = sbr.rel (0) target = $region25
    $region24: #{_appearance_step.2} parent=1 // pred_region
      _
    $region25: #{_appearance_step.2} parent=1 // pred_fallthru
      _
    // Predicated region
    $region26: #{_appearance_step.2} parent=1 // pred_check
      _
    $region27: #{_appearance_step.2} parent=1 // pred_check_branch
      %242 = sbr.rel (0) target = $region29
    $region28: #{_appearance_step.2} parent=1 // pred_region
      %s244 = ssub.s32 256, 256
      %245 = vsyncadd [#allocation3], %s244
      %s247 = sshll.u32 [#allocation2], 4
      %s248 = int_to_ptr.vmem [resolvable:$true] %s247
      %250 = dma.vmem_to_hbm [thread:$0]  %s248, 256, %s6, [#allocation3]
    $region29: #{_appearance_step.2} parent=1 // pred_fallthru
      _
    // Predicated region
    $region30: #{_appearance_step.2} parent=1 // pred_check
      _
    $region31: #{_appearance_step.2} parent=1 // pred_check_branch
      %252 = sbr.rel (0) target = $region33
    $region32: #{_appearance_step.2} parent=1 // pred_region
      _
    $region33: #{_appearance_step.2} parent=1 // pred_fallthru
      _
    // Predicated region
    $region34: #{_appearance_step.2} parent=1 // pred_check
      _
    $region35: #{_appearance_step.2} parent=1 // pred_check_branch
      %254 = sbr.rel (0) target = $region37
    $region36: #{_appearance_step.2} parent=1 // pred_region
      %255 = dma.done [#allocation3], 256
    $region37: #{_appearance_step.2} parent=1 // pred_fallthru
      _
    %256 = vsyncpa [#allocation3], 1

// kernel: _appearance_step.3
$region0: #{_appearance_step.3}
  #allocation0 [shape = 'u32[]', space=smem, size = 0x4, offset = 0x4, fixed_abs, tag = 'smem constant byte address 0x4 - core index']
  #allocation1 [shape = 'u32[144,128]{1,0:T(1,128)}', space=vmem, size = 0x12000, scoped, tag = 'internal scratch']
  %s0 = inlined_call_operand.vmem [shape: f32[8,1024], index: 0, kind: input, shape index: {}]
  %s1 = inlined_call_operand.vmem [shape: f32[32,8], index: 1, kind: input, shape index: {}]
  %s2 = inlined_call_operand.vmem [shape: f32[40,1], index: 2, kind: input, shape index: {}]
  %s3 = inlined_call_operand.vmem [shape: f32[8,32], index: 3, kind: input, shape index: {}]
  %s4 = inlined_call_operand.vmem [shape: f32[8,1024], index: 4, kind: input, shape index: {}]
  %s5 = inlined_call_operand.hbm [shape: f32[8,1024], index: 5, kind: output, shape index: {0}]
  %s6 = inlined_call_operand.vmem [shape: f32[1,1024], index: 6, kind: output, shape index: {1}]
  %7 = xla_tuple %s5, %s6
  %s8 = sld [smem:[#allocation0]]
  $region61: #{_appearance_step.3} parent=0
    _
  %s10 = ssub.s32 1, %s8
  %s11 = scalar_select 0, %s10, %s8
  $region1: #{_appearance_step.3} parent=0
    #allocation2 [shape = 'u8[32768]{0}', space=vmem, size = 0x8000, scoped, tag = 'output window, operand 0']
    #allocation3 [shape = 's32[2]{0}', space=sflag, size = 0x8, scoped, tag = 'scoped memory for _appearance_step.3']
    %12 = vsyncpa [#allocation3], 0
    %s13 = scalar_lea.sflag [#allocation3], 1
    %14 = vsyncpa %s13, 0
    loop: start=0, step=1, limit=4
    $region2: #{_appearance_step.3} parent=1 // loop_pre_header
      _
    $region3: #{_appearance_step.3} parent=1 // loop_header
      %s16 = sphi 0, %s20
      %p17 = scmp.ge.s32.totalorder %s16, 4
      %s26 = sphi 0, %s28
      %s29 = sphi 0, %s26
      %s30 = sphi 0, %s29
      %s46 = sphi 0, %s30
      %s50 = sphi 0, %s50
      %s52 = sphi 0, %s50
      %s53 = sphi 0, %s52
      %s67 = sphi 0, %s53
      %s71 = sphi 0, %s71
      %s73 = sphi 0, %s71
      %s74 = sphi 0, %s73
      %s88 = sphi 0, %s74
      %s92 = sphi 0, %s92
      %s94 = sphi 0, %s92
      %s95 = sphi 0, %s94
      %s109 = sphi 0, %s95
      %s115 = sphi 0, %s117
      %s118 = sphi 0, %s115
      %s119 = sphi 0, %s118
      %s135 = sphi 0, %s119
      %s141 = sphi 0, %s143
      %s144 = sphi 0, %s141
      %s145 = sphi 0, %s144
      %s161 = sphi 0, %s145
      %s167 = sphi 0, %s169
      %s170 = sphi 0, %s167
      %s171 = sphi 0, %s170
      %s187 = sphi 0, %s171
    $region4: #{_appearance_step.3} parent=1 // loop_header_branch
      %19 = sbr.rel (%p17) target = $region8
    $region5: #{_appearance_step.3} parent=1 // loop_body
      %s21 = ssub.s32 %s16, 1
      %s22 = ssub.s32 %s16, 2
      %s23 = sadd.s32 %s16, 1
      %s24 = ssub.s32 %s16, %s23
      %p25 = scmp.eq.s32.totalorder %s24, 0
      %s27 = sadd.s32 %s26, 1
      %s28 = scalar_select %p25, %s26, %s27
      %p31 = pneg %p25
      %p32 = scmp.eq.s32.totalorder %s16, 1
      %p33 = por %p31, %p32
      %p34 = scmp.ne.s32.totalorder %s26, %s29
      %p35 = scmp.eq.s32.totalorder %s16, 0
      %p36 = por %p34, %p35
      %p37 = scmp.ne.s32.totalorder %s26, %s29
      %p38 = scmp.eq.s32.totalorder %s21, 1
      %p39 = por %p37, %p38
      %p40 = scmp.ne.s32.totalorder %s29, %s30
      %p41 = scmp.eq.s32.totalorder %s21, 0
      %p42 = por %p40, %p41
      %p43 = scmp.ne.s32.totalorder %s29, %s30
      %p44 = scmp.eq.s32.totalorder %s22, 1
      %p45 = por %p43, %p44
      %p47 = scmp.ne.s32.totalorder %s30, %s46
      %p48 = scmp.eq.s32.totalorder %s22, 0
      %p49 = por %p47, %p48
      %s51 = sadd.s32 %s50, 1
      %p54 = scmp.eq.s32.totalorder %s16, 1
      %p55 = scmp.ne.s32.totalorder %s50, %s52
      %p56 = scmp.eq.s32.totalorder %s16, 0
      %p57 = por %p55, %p56
      %p58 = scmp.ne.s32.totalorder %s50, %s52
      %p59 = scmp.eq.s32.totalorder %s21, 1
      %p60 = por %p58, %p59
      %p61 = scmp.ne.s32.totalorder %s52, %s53
      %p62 = scmp.eq.s32.totalorder %s21, 0
      %p63 = por %p61, %p62
      %p64 = scmp.ne.s32.totalorder %s52, %s53
      %p65 = scmp.eq.s32.totalorder %s22, 1
      %p66 = por %p64, %p65
      %p68 = scmp.ne.s32.totalorder %s53, %s67
      %p69 = scmp.eq.s32.totalorder %s22, 0
      %p70 = por %p68, %p69
      %s72 = sadd.s32 %s71, 1
      %p75 = scmp.eq.s32.totalorder %s16, 1
      %p76 = scmp.ne.s32.totalorder %s71, %s73
      %p77 = scmp.eq.s32.totalorder %s16, 0
      %p78 = por %p76, %p77
      %p79 = scmp.ne.s32.totalorder %s71, %s73
      %p80 = scmp.eq.s32.totalorder %s21, 1
      %p81 = por %p79, %p80
      %p82 = scmp.ne.s32.totalorder %s73, %s74
      %p83 = scmp.eq.s32.totalorder %s21, 0
      %p84 = por %p82, %p83
      %p85 = scmp.ne.s32.totalorder %s73, %s74
      %p86 = scmp.eq.s32.totalorder %s22, 1
      %p87 = por %p85, %p86
      %p89 = scmp.ne.s32.totalorder %s74, %s88
      %p90 = scmp.eq.s32.totalorder %s22, 0
      %p91 = por %p89, %p90
      %s93 = sadd.s32 %s92, 1
      %p96 = scmp.eq.s32.totalorder %s16, 1
      %p97 = scmp.ne.s32.totalorder %s92, %s94
      %p98 = scmp.eq.s32.totalorder %s16, 0
      %p99 = por %p97, %p98
      %p100 = scmp.ne.s32.totalorder %s92, %s94
      %p101 = scmp.eq.s32.totalorder %s21, 1
      %p102 = por %p100, %p101
      %p103 = scmp.ne.s32.totalorder %s94, %s95
      %p104 = scmp.eq.s32.totalorder %s21, 0
      %p105 = por %p103, %p104
      %p106 = scmp.ne.s32.totalorder %s94, %s95
      %p107 = scmp.eq.s32.totalorder %s22, 1
      %p108 = por %p106, %p107
      %p110 = scmp.ne.s32.totalorder %s95, %s109
      %p111 = scmp.eq.s32.totalorder %s22, 0
      %p112 = por %p110, %p111
      %s113 = ssub.s32 %s16, %s23
      %p114 = scmp.eq.s32.totalorder %s113, 0
      %s116 = sadd.s32 %s115, 1
      %s117 = scalar_select %p114, %s115, %s116
      %p120 = pneg %p114
      %p121 = scmp.eq.s32.totalorder %s16, 1
      %p122 = por %p120, %p121
      %p123 = scmp.ne.s32.totalorder %s115, %s118
      %p124 = scmp.eq.s32.totalorder %s16, 0
      %p125 = por %p123, %p124
      %p126 = scmp.ne.s32.totalorder %s115, %s118
      %p127 = scmp.eq.s32.totalorder %s21, 1
      %p128 = por %p126, %p127
      %p129 = scmp.ne.s32.totalorder %s118, %s119
      %p130 = scmp.eq.s32.totalorder %s21, 0
      %p131 = por %p129, %p130
      %p132 = scmp.ne.s32.totalorder %s118, %s119
      %p133 = scmp.eq.s32.totalorder %s22, 1
      %p134 = por %p132, %p133
      %p136 = scmp.ne.s32.totalorder %s119, %s135
      %p137 = scmp.eq.s32.totalorder %s22, 0
      %p138 = por %p136, %p137
      %s139 = ssub.s32 %s16, %s23
      %p140 = scmp.eq.s32.totalorder %s139, 0
      %s142 = sadd.s32 %s141, 1
      %s143 = scalar_select %p140, %s141, %s142
      %p146 = pneg %p140
      %p147 = scmp.eq.s32.totalorder %s16, 1
      %p148 = por %p146, %p147
      %p149 = scmp.ne.s32.totalorder %s141, %s144
      %p150 = scmp.eq.s32.totalorder %s16, 0
      %p151 = por %p149, %p150
      %p152 = scmp.ne.s32.totalorder %s141, %s144
      %p153 = scmp.eq.s32.totalorder %s21, 1
      %p154 = por %p152, %p153
      %p155 = scmp.ne.s32.totalorder %s144, %s145
      %p156 = scmp.eq.s32.totalorder %s21, 0
      %p157 = por %p155, %p156
      %p158 = scmp.ne.s32.totalorder %s144, %s145
      %p159 = scmp.eq.s32.totalorder %s22, 1
      %p160 = por %p158, %p159
      %p162 = scmp.ne.s32.totalorder %s145, %s161
      %p163 = scmp.eq.s32.totalorder %s22, 0
      %p164 = por %p162, %p163
      %s165 = ssub.s32 %s16, %s23
      %p166 = scmp.eq.s32.totalorder %s165, 0
      %s168 = sadd.s32 %s167, 1
      %s169 = scalar_select %p166, %s167, %s168
      %p172 = pneg %p166
      %p173 = scmp.eq.s32.totalorder %s16, 1
      %p174 = por %p172, %p173
      %p175 = scmp.ne.s32.totalorder %s167, %s170
      %p176 = scmp.eq.s32.totalorder %s16, 0
      %p177 = por %p175, %p176
      %p178 = scmp.ne.s32.totalorder %s167, %s170
      %p179 = scmp.eq.s32.totalorder %s21, 1
      %p180 = por %p178, %p179
      %p181 = scmp.ne.s32.totalorder %s170, %s171
      %p182 = scmp.eq.s32.totalorder %s21, 0
      %p183 = por %p181, %p182
      %p184 = scmp.ne.s32.totalorder %s170, %s171
      %p185 = scmp.eq.s32.totalorder %s22, 1
      %p186 = por %p184, %p185
      %p188 = scmp.ne.s32.totalorder %s171, %s187
      %p189 = scmp.eq.s32.totalorder %s22, 0
      %p190 = por %p188, %p189
      %p191 = scmp.le.s32.totalorder 1, %s16
      %p192 = scmp.lt.s32.totalorder %s16, 3
      %p193 = pnand %p191, %p192
      %p194 = pneg %p193
      // Predicated region
      $region9: #{_appearance_step.3} parent=5 // pred_check
        _
      $region10: #{_appearance_step.3} parent=5 // pred_check_branch
        %196 = sbr.rel (%p193) target = $region12
      $region11: #{_appearance_step.3} parent=5 // pred_region
        %s197 = ssub.s32 %s16, 1
        // Predicated region
        $region13: #{_appearance_step.3} parent=11 // pred_check
          %p198 = pneg %p63
        $region14: #{_appearance_step.3} parent=11 // pred_check_branch
          %200 = sbr.rel (%p198) target = $region16
        $region15: #{_appearance_step.3} parent=11 // pred_region
          _
        $region16: #{_appearance_step.3} parent=11 // pred_fallthru
          _
        // Predicated region
        $region17: #{_appearance_step.3} parent=11 // pred_check
          %p201 = pneg %p84
        $region18: #{_appearance_step.3} parent=11 // pred_check_branch
          %203 = sbr.rel (%p201) target = $region20
        $region19: #{_appearance_step.3} parent=11 // pred_region
          _
        $region20: #{_appearance_step.3} parent=11 // pred_fallthru
          _
        // Predicated region
        $region21: #{_appearance_step.3} parent=11 // pred_check
          %p204 = pneg %p105
        $region22: #{_appearance_step.3} parent=11 // pred_check_branch
          %206 = sbr.rel (%p204) target = $region24
        $region23: #{_appearance_step.3} parent=11 // pred_region
          _
        $region24: #{_appearance_step.3} parent=11 // pred_fallthru
          _
      $region12: #{_appearance_step.3} parent=5 // pred_fallthru
        _
      %p207 = scmp.lt.s32.totalorder %s16, 2
      // Predicated region
      $region25: #{_appearance_step.3} parent=5 // pred_check
        %p208 = pneg %p207
      $region26: #{_appearance_step.3} parent=5 // pred_check_branch
        %210 = sbr.rel (%p208) target = $region28
      $region27: #{_appearance_step.3} parent=5 // pred_region
        // Predicated region
        $region29: #{_appearance_step.3} parent=27 // pred_check
          %p211 = pneg %p36
        $region30: #{_appearance_step.3} parent=27 // pred_check_branch
          %213 = sbr.rel (%p211) target = $region32
        $region31: #{_appearance_step.3} parent=27 // pred_region
          %s214 = smul.u32 4, %s16
          %p215 = scmp.lt.s32.totalorder %s214, 7
          %s216 = scalar_select %p215, %s214, 7
          %s217 = smul.addr %s216, 8
          %s218 = scalar_lea.vmem %s0, %s217
          %s219 = smul.u32 4, %s16
        $region32: #{_appearance_step.3} parent=27 // pred_fallthru
          _
        // Predicated region
        $region33: #{_appearance_step.3} parent=27 // pred_check
          %p220 = pneg %p125
        $region34: #{_appearance_step.3} parent=27 // pred_check_branch
          %222 = sbr.rel (%p220) target = $region36
        $region35: #{_appearance_step.3} parent=27 // pred_region
          %s223 = smul.u32 4, %s16
          %p224 = scmp.lt.s32.totalorder %s223, 7
          %s225 = scalar_select %p224, %s223, 7
          %s226 = smul.addr %s225, 8
          %s227 = scalar_lea.vmem %s4, %s226
          %s228 = smul.u32 4, %s16
        $region36: #{_appearance_step.3} parent=27 // pred_fallthru
          _
      $region28: #{_appearance_step.3} parent=5 // pred_fallthru
        _
      %p229 = scmp.le.s32.totalorder 1, %s16
      %p230 = scmp.lt.s32.totalorder %s16, 3
      %p231 = pnand %p229, %p230
      %p232 = pneg %p231
      // Predicated region
      $region37: #{_appearance_step.3} parent=5 // pred_check
        _
      $region38: #{_appearance_step.3} parent=5 // pred_check_branch
        %234 = sbr.rel (%p231) target = $region40
      $region39: #{_appearance_step.3} parent=5 // pred_region
        %s235 = ssub.s32 %s16, 1
        %s236 = smul.u32 4, %s21
        %p237 = scmp.lt.s32.totalorder %s236, 7
        %s238 = scalar_select %p237, %s236, 7
        %s239 = smul.addr %s238, 8
        %s240 = scalar_lea.vmem %s0, %s239
        %p241 = pneg %p42
        %p242 = pneg %p39
        %p243 = pneg %p63
        %p244 = pneg %p60
        %p245 = pneg %p84
        %p246 = pneg %p81
        %p247 = pneg %p105
        %p248 = pneg %p102
        %s249 = smul.u32 4, %s21
        %p250 = scmp.lt.s32.totalorder %s249, 7
        %s251 = scalar_select %p250, %s249, 7
        %s252 = smul.addr %s251, 8
        %s253 = scalar_lea.vmem %s4, %s252
        %p254 = pneg %p131
        %p255 = pneg %p128
        %p256 = pneg %p157
        %p257 = pneg %p154
        %s258 = sand.u32 %s144, 1
        %s259 = scalar_lea.sflag [#allocation3], %s258
        %s260 = sand.u32 %s144, 1
        %s261 = smul.addr %s260, 32
        %s262 = scalar_lea.vmem [#allocation2], %s261
        %p263 = pneg %p183
        %p264 = pneg %p180
        %s265 = smul.u32 4, %s21
        %p266 = scmp.lt.s32.totalorder %s265, 7
        %s267 = scalar_select %p266, %s265, 7
        %s268 = scalar_lea.vmem %s6, %s267
        %s269 = smul.u32 4, %s21
        %p270 = scmp.lt.s32.totalorder %s269, 7
        %s271 = scalar_select %p270, %s269, 7
        %s272 = smul.addr %s271, 8
        %s273 = scalar_lea.vmem %s0, %s272
        %s274 = smul.u32 4, %s21
        %s275 = smul.u32 4, %s21
        %p276 = scmp.lt.s32.totalorder %s275, 7
        %s277 = scalar_select %p276, %s275, 7
        %s278 = smul.addr %s277, 8
        %s279 = scalar_lea.vmem %s4, %s278
        %s280 = smul.u32 4, %s21
        %s281 = smul.u32 4, %s21
        %s282 = smul.u32 4, %s21
        %p283 = scmp.lt.s32.totalorder %s282, 7
        %s284 = scalar_select %p283, %s282, 7
        %s285 = scalar_lea.vmem %s6, %s284
        %s286 = smul.u32 4, %s21
        %v288 = vld [vmem:[%s2] sm:$0xff]
        %v289 = vld [vmem:[%s2 + $0x8] sm:$0xff]
        %v290 = vld [vmem:[%s2 + $0x10] sm:$0xff]
        %v291 = vld [vmem:[%s2 + $0x18] sm:$0xff]
        %v292 = vld [vmem:[%s2 + $0x20] sm:$0xff]
        %v293 = vld [vmem:[%s1] sm:$0xff]
        %v294 = vld [vmem:[%s1 + $0x8] sm:$0xff]
        %v295 = vld [vmem:[%s1 + $0x10] sm:$0xff]
        %v296 = vld [vmem:[%s1 + $0x18] sm:$0xff]
        %v297 = vld [vmem:[%s273] sm:$0xff]
        %v298 = vld [vmem:[%s273 + $0x8] sm:$0xff]
        %v299 = vld [vmem:[%s273 + $0x10] sm:$0xff]
        %v300 = vld [vmem:[%s273 + $0x18] sm:$0xff]
        %v301 = vpack.c.bf16 %v294, %v293
        %v302 = vpack.c.bf16 %v296, %v295
        %v303 = vpack.c.bf16 %v297, %v297
        %v304 = vpack.c.bf16 %v298, %v298
        %v305 = vpack.c.bf16 %v299, %v299
        %v306 = vpack.c.bf16 %v300, %v300
        %308 = vset.pattern.permute.xlu0 0
        %309 = vperm.xlu0 %308, %v288
        %v310 = vpop.permute.xlu0 %309
        %313 = vset.pattern.permute.xlu0 0
        %314 = vperm.xlu0 %313, %v289
        %v315 = vpop.permute.xlu0 %314
        %318 = vset.pattern.permute.xlu0 0
        %319 = vperm.xlu0 %318, %v290
        %v320 = vpop.permute.xlu0 %319
        %323 = vset.pattern.permute.xlu0 0
        %324 = vperm.xlu0 %323, %v291
        %v325 = vpop.permute.xlu0 %324
        %vm327 = vcmask 64512
        %v329 = vsel %vm327, %v301, 0
        %v332 = vsel %vm327, %v302, 0
        %vm334 = vcmask 1043456
        %v336 = vsel %vm334, %v303, 0
        %v339 = vsel %vm334, %v304, 0
        %v342 = vsel %vm334, %v305, 0
        %v345 = vsel %vm334, %v306, 0
        %347 = vmatprep.subr.bf16.mxu0 0
        %348 = vmatpush1.bf16.msra.mxu0 0
        %349 = vmatprep.subr.bf16.mxu0 0
        %350 = vmatpush1.bf16.msra.mxu0 0
        %351 = vmatprep.subr.bf16.mxu0 0
        %352 = vmatpush1.bf16.msra.mxu0 0
        %353 = vmatprep.subr.bf16.mxu0 0
        %354 = vmatpush1.bf16.msra.mxu0 0
        %355 = vmatprep.subr.bf16.mxu0 0
        %356 = vmatpush1.bf16.msra.mxu0 0
        %357 = vmatprep.subr.bf16.mxu0 0
        %358 = vmatpush1.bf16.msra.mxu0 0
        %359 = vmatprep.subr.bf16.mxu0 0
        %360 = vmatpush1.bf16.msra.mxu0 0
        %361 = vmatprep.subr.bf16.mxu0 %v339
        %362 = vmatpush1.bf16.msra.mxu0 %v336
        %363 = vmatprep.subr.bf16.mxu0 0
        %364 = vmatpush2.bf16.msra.mxu0 0
        %365 = vmatprep.subr.bf16.mxu0 0
        %366 = vmatpush2.bf16.msra.mxu0 0
        %367 = vmatprep.subr.bf16.mxu0 0
        %368 = vmatpush2.bf16.msra.mxu0 0
        %369 = vmatprep.subr.bf16.mxu0 0
        %370 = vmatpush2.bf16.msra.mxu0 0
        %371 = vmatprep.subr.bf16.mxu0 0
        %372 = vmatpush2.bf16.msra.mxu0 0
        %373 = vmatprep.subr.bf16.mxu0 0
        %374 = vmatpush2.bf16.msra.mxu0 0
        %375 = vmatprep.subr.bf16.mxu0 0
        %376 = vmatpush2.bf16.msra.mxu0 0
        %377 = vmatprep.subr.bf16.mxu0 0
        %378 = vmatpush2.bf16.msra.mxu0 0
        %379 = vmatprep.mubr.bf16.mxu0 0
        %380 = vmatmul.mubr.bf16.gmra.mxu0 %v329
        %v381 = vpop.f32.mrf.mxu0
        %v382 = vadd.f32 %v310, %v381
        %v383 = vpop.f32.mrf.mxu0
        %v384 = vadd.f32 %v310, %v383
        %v385 = vpop.f32.mrf.mxu0
        %v386 = vadd.f32 %v315, %v385
        %v387 = vpop.f32.mrf.mxu0
        %v388 = vadd.f32 %v315, %v387
        %389 = vmatprep.mubr.bf16.mxu0 0
        %390 = vmatmul.mubr.bf16.gmra.mxu0 %v332
        %v391 = vpop.f32.mrf.mxu0
        %v392 = vadd.f32 %v320, %v391
        %v393 = vpop.f32.mrf.mxu0
        %v394 = vadd.f32 %v320, %v393
        %v395 = vpop.f32.mrf.mxu0
        %v396 = vadd.f32 %v325, %v395
        %v397 = vpop.f32.mrf.mxu0
        %v398 = vadd.f32 %v325, %v397
        %399 = vdwg.mxu0
        %400 = vmatprep.subr.bf16.mxu0 0
        %401 = vmatpush1.bf16.msra.mxu0 0
        %402 = vmatprep.subr.bf16.mxu0 0
        %403 = vmatpush1.bf16.msra.mxu0 0
        %404 = vmatprep.subr.bf16.mxu0 0
        %405 = vmatpush1.bf16.msra.mxu0 0
        %406 = vmatprep.subr.bf16.mxu0 0
        %407 = vmatpush1.bf16.msra.mxu0 0
        %408 = vmatprep.subr.bf16.mxu0 0
        %409 = vmatpush1.bf16.msra.mxu0 0
        %410 = vmatprep.subr.bf16.mxu0 0
        %411 = vmatpush1.bf16.msra.mxu0 0
        %412 = vmatprep.subr.bf16.mxu0 0
        %413 = vmatpush1.bf16.msra.mxu0 0
        %414 = vmatprep.subr.bf16.mxu0 %v345
        %415 = vmatpush1.bf16.msra.mxu0 %v342
        %416 = vmatprep.subr.bf16.mxu0 0
        %417 = vmatpush2.bf16.msra.mxu0 0
        %418 = vmatprep.subr.bf16.mxu0 0
        %419 = vmatpush2.bf16.msra.mxu0 0
        %420 = vmatprep.subr.bf16.mxu0 0
        %421 = vmatpush2.bf16.msra.mxu0 0
        %422 = vmatprep.subr.bf16.mxu0 0
        %423 = vmatpush2.bf16.msra.mxu0 0
        %424 = vmatprep.subr.bf16.mxu0 0
        %425 = vmatpush2.bf16.msra.mxu0 0
        %426 = vmatprep.subr.bf16.mxu0 0
        %427 = vmatpush2.bf16.msra.mxu0 0
        %428 = vmatprep.subr.bf16.mxu0 0
        %429 = vmatpush2.bf16.msra.mxu0 0
        %430 = vmatprep.subr.bf16.mxu0 0
        %431 = vmatpush2.bf16.msra.mxu0 0
        %432 = vmatprep.mubr.bf16.mxu0 0
        %433 = vmatmul.mubr.bf16.gmra.mxu0 %v329
        %v434 = vpop.f32.mrf.mxu0
        %v435 = vadd.f32 %v310, %v434
        %v436 = vpop.f32.mrf.mxu0
        %v437 = vadd.f32 %v310, %v436
        %v438 = vpop.f32.mrf.mxu0
        %v439 = vadd.f32 %v315, %v438
        %v440 = vpop.f32.mrf.mxu0
        %v441 = vadd.f32 %v315, %v440
        %442 = vmatprep.mubr.bf16.mxu0 0
        %443 = vmatmul.mubr.bf16.gmra.mxu0 %v332
        %v444 = vpop.f32.mrf.mxu0
        %v445 = vadd.f32 %v320, %v444
        %v446 = vpop.f32.mrf.mxu0
        %v447 = vadd.f32 %v320, %v446
        %v448 = vpop.f32.mrf.mxu0
        %v449 = vadd.f32 %v325, %v448
        %v450 = vpop.f32.mrf.mxu0
        %v451 = vadd.f32 %v325, %v450
        %452 = vdwg.mxu0
        %v453 = vmax.f32 %v382, 0.0
        %v454 = vmax.f32 %v384, 0.0
        %v455 = vmax.f32 %v435, 0.0
        %v456 = vmax.f32 %v437, 0.0
        %v457 = vmax.f32 %v386, 0.0
        %v458 = vmax.f32 %v388, 0.0
        %v459 = vmax.f32 %v439, 0.0
        %v460 = vmax.f32 %v441, 0.0
        %v461 = vmax.f32 %v392, 0.0
        %v462 = vmax.f32 %v394, 0.0
        %v463 = vmax.f32 %v445, 0.0
        %v464 = vmax.f32 %v447, 0.0
        %v465 = vmax.f32 %v396, 0.0
        %v466 = vmax.f32 %v398, 0.0
        %v467 = vmax.f32 %v449, 0.0
        %v468 = vmax.f32 %v451, 0.0
        %v469 = vld [vmem:[%s3] sm:$0xff]
        %v470 = vpack.c.bf16 %v469, %v469
        %v471 = vpack.c.bf16 %v457, %v453
        %v472 = vpack.c.bf16 %v458, %v454
        %v473 = vpack.c.bf16 %v459, %v455
        %v474 = vpack.c.bf16 %v460, %v456
        %v475 = vpack.c.bf16 %v465, %v461
        %v476 = vpack.c.bf16 %v466, %v462
        %v477 = vpack.c.bf16 %v467, %v463
        %v478 = vpack.c.bf16 %v468, %v464
        %480 = vset.pattern.permute.xlu0 0
        %481 = vperm.xlu0 %480, %v292
        %v482 = vpop.permute.xlu0 %481
        %vm484 = vcmask 261120
        %v486 = vsel %vm484, %v470, 0
        %488 = vmatprep.subr.bf16.mxu0 0
        %489 = vmatpush1.bf16.msra.mxu0 0
        %490 = vmatprep.subr.bf16.mxu0 0
        %491 = vmatpush1.bf16.msra.mxu0 0
        %492 = vmatprep.subr.bf16.mxu0 0
        %493 = vmatpush1.bf16.msra.mxu0 0
        %494 = vmatprep.subr.bf16.mxu0 0
        %495 = vmatpush1.bf16.msra.mxu0 0
        %496 = vmatprep.subr.bf16.mxu0 0
        %497 = vmatpush1.bf16.msra.mxu0 0
        %498 = vmatprep.subr.bf16.mxu0 0
        %499 = vmatpush1.bf16.msra.mxu0 0
        %500 = vmatprep.subr.bf16.mxu0 %v476
        %501 = vmatpush1.bf16.msra.mxu0 %v475
        %502 = vmatprep.subr.bf16.mxu0 %v472
        %503 = vmatpush1.bf16.msra.mxu0 %v471
        %504 = vmatprep.subr.bf16.mxu0 0
        %505 = vmatpush2.bf16.msra.mxu0 0
        %506 = vmatprep.subr.bf16.mxu0 0
        %507 = vmatpush2.bf16.msra.mxu0 0
        %508 = vmatprep.subr.bf16.mxu0 0
        %509 = vmatpush2.bf16.msra.mxu0 0
        %510 = vmatprep.subr.bf16.mxu0 0
        %511 = vmatpush2.bf16.msra.mxu0 0
        %512 = vmatprep.subr.bf16.mxu0 0
        %513 = vmatpush2.bf16.msra.mxu0 0
        %514 = vmatprep.subr.bf16.mxu0 0
        %515 = vmatpush2.bf16.msra.mxu0 0
        %516 = vmatprep.subr.bf16.mxu0 0
        %517 = vmatpush2.bf16.msra.mxu0 0
        %518 = vmatprep.subr.bf16.mxu0 0
        %519 = vmatpush2.bf16.msra.mxu0 0
        %520 = vmatprep.mubr.bf16.mxu0 0
        %521 = vmatmul.mubr.bf16.gmra.mxu0 %v486
        %v522 = vpop.f32.mrf.mxu0
        %v523 = vadd.f32 %v482, %v522
        %v524 = vpop.f32.mrf.mxu0
        %v525 = vadd.f32 %v482, %v524
        %v526 = vpop.f32.mrf.mxu0
        %v527 = vpop.f32.mrf.mxu0
        %528 = vdwg.mxu0
        %529 = vmatprep.subr.bf16.mxu0 0
        %530 = vmatpush1.bf16.msra.mxu0 0
        %531 = vmatprep.subr.bf16.mxu0 0
        %532 = vmatpush1.bf16.msra.mxu0 0
        %533 = vmatprep.subr.bf16.mxu0 0
        %534 = vmatpush1.bf16.msra.mxu0 0
        %535 = vmatprep.subr.bf16.mxu0 0
        %536 = vmatpush1.bf16.msra.mxu0 0
        %537 = vmatprep.subr.bf16.mxu0 0
        %538 = vmatpush1.bf16.msra.mxu0 0
        %539 = vmatprep.subr.bf16.mxu0 0
        %540 = vmatpush1.bf16.msra.mxu0 0
        %541 = vmatprep.subr.bf16.mxu0 %v478
        %542 = vmatpush1.bf16.msra.mxu0 %v477
        %543 = vmatprep.subr.bf16.mxu0 %v474
        %544 = vmatpush1.bf16.msra.mxu0 %v473
        %545 = vmatprep.subr.bf16.mxu0 0
        %546 = vmatpush2.bf16.msra.mxu0 0
        %547 = vmatprep.subr.bf16.mxu0 0
        %548 = vmatpush2.bf16.msra.mxu0 0
        %549 = vmatprep.subr.bf16.mxu0 0
        %550 = vmatpush2.bf16.msra.mxu0 0
        %551 = vmatprep.subr.bf16.mxu0 0
        %552 = vmatpush2.bf16.msra.mxu0 0
        %553 = vmatprep.subr.bf16.mxu0 0
        %554 = vmatpush2.bf16.msra.mxu0 0
        %555 = vmatprep.subr.bf16.mxu0 0
        %556 = vmatpush2.bf16.msra.mxu0 0
        %557 = vmatprep.subr.bf16.mxu0 0
        %558 = vmatpush2.bf16.msra.mxu0 0
        %559 = vmatprep.subr.bf16.mxu0 0
        %560 = vmatpush2.bf16.msra.mxu0 0
        %561 = vmatprep.mubr.bf16.mxu0 0
        %562 = vmatmul.mubr.bf16.gmra.mxu0 %v486
        %v563 = vpop.f32.mrf.mxu0
        %v564 = vadd.f32 %v482, %v563
        %v565 = vpop.f32.mrf.mxu0
        %v566 = vadd.f32 %v482, %v565
        %v567 = vpop.f32.mrf.mxu0
        %v568 = vpop.f32.mrf.mxu0
        %569 = vdwg.mxu0
        %570 = vst [vmem:[%s262] sm:$0xff] %v523
        %571 = vst [vmem:[%s262 + $0x8] sm:$0xff] %v525
        %572 = vst [vmem:[%s262 + $0x10] sm:$0xff] %v564
        %573 = vst [vmem:[%s262 + $0x18] sm:$0xff] %v566
        %v574 = vld [vmem:[%s279] sm:$0xff]
        %v575 = vld [vmem:[%s279 + $0x8] sm:$0xff]
        %v576 = vld [vmem:[%s279 + $0x10] sm:$0xff]
        %v577 = vld [vmem:[%s279 + $0x18] sm:$0xff]
        %v578 = vsub.f32 %v523, %v574
        %v579 = vsub.f32 %v525, %v575
        %v580 = vsub.f32 %v564, %v576
        %v581 = vsub.f32 %v566, %v577
        %v582 = vmul.f32 %v578, %v578
        %v583 = vmul.f32 %v579, %v579
        %v584 = vmul.f32 %v580, %v580
        %v585 = vmul.f32 %v581, %v581
        %v586 = vrot.slane %v582, 4
        %v587 = vadd.f32 %v582, %v586
        %v588 = vrot.slane %v587, 2
        %v589 = vadd.f32 %v587, %v588
        %v590 = vrot.slane %v589, 1
        %v591 = vadd.f32 %v589, %v590
        %v592 = vrot.slane %v583, 4
        %v593 = vadd.f32 %v583, %v592
        %v594 = vrot.slane %v593, 2
        %v595 = vadd.f32 %v593, %v594
        %v596 = vrot.slane %v595, 1
        %v597 = vadd.f32 %v595, %v596
        %v598 = vrot.slane %v584, 4
        %v599 = vadd.f32 %v584, %v598
        %v600 = vrot.slane %v599, 2
        %v601 = vadd.f32 %v599, %v600
        %v602 = vrot.slane %v601, 1
        %v603 = vadd.f32 %v601, %v602
        %v604 = vrot.slane %v585, 4
        %v605 = vadd.f32 %v585, %v604
        %v606 = vrot.slane %v605, 2
        %v607 = vadd.f32 %v605, %v606
        %v608 = vrot.slane %v607, 1
        %v609 = vadd.f32 %v607, %v608
        %v614 = vcombine.low %v591, %v597
        %v615 = vcombine.low %v603, %v609
        %v617 = vunpack.c.l.s4 1966171168
        %v618 = vunpack.c.0.s8 %v617
        %v619 = vlaneseq
        %v620 = vshrl.u32 %v619, 7
        %v621 = vsub.s32 %v618, %v620
        %v622 = vrot.slane %v614, %v621
        %v624 = vunpack.c.l.s4 1966171168
        %v625 = vunpack.c.0.s8 %v624
        %v626 = vlaneseq
        %v627 = vshrl.u32 %v626, 7
        %v628 = vsub.s32 %v625, %v627
        %v629 = vrot.slane %v615, %v628
        %v630 = vcombine.low %v622, %v629
        %v632 = vunpack.c.l.s4 1966171168
        %v633 = vunpack.c.0.s8 %v632
        %v634 = vlaneseq
        %v635 = vshrl.u32 %v634, 7
        %v636 = vsub.s32 %v633, %v635
        %v637 = vrot.slane %v630, %v636
        %v639 = vlaneseq
        %vm640 = vcmp.ge.s32.totalorder %v639, 0
        %vm641 = vcmp.lt.s32.totalorder %v639, 512
        %vm642 = vmand %vm640, %vm641
        %643 = vst.msk [vmem:[%s285] sm:$0xf] %vm642, %v637
        %s644 = sand.u32 %s144, 1
        %s645 = scalar_lea.sflag [#allocation3], %s644
        %s646 = sand.u32 %s144, 1
        %s647 = smul.addr %s646, 32
        %s648 = scalar_lea.vmem [#allocation2], %s647
        %s649 = smul.u32 4, %s21
        %p650 = scmp.lt.s32.totalorder %s649, 7
        %s651 = scalar_select %p650, %s649, 7
        %s652 = scalar_lea.vmem %s6, %s651
        // Predicated region
        $region41: #{_appearance_step.3} parent=39 // pred_check
          %p653 = pneg %p154
        $region42: #{_appearance_step.3} parent=39 // pred_check_branch
          %655 = sbr.rel (%p653) target = $region44
        $region43: #{_appearance_step.3} parent=39 // pred_region
          %s656 = smul.u32 4, %s21
          %s658 = ssub.s32 512, 512
          %659 = vsyncadd %s645, %s658
          %s660 = smul.addr %s656, 128
          %s661 = scalar_lea.hbm %s5, %s660
          %s663 = sshll.u32 %s648, 4
          %s664 = int_to_ptr.vmem [resolvable:$true] %s663
          %666 = dma.vmem_to_hbm [thread:$0]  %s664, 512, %s661, %s645
        $region44: #{_appearance_step.3} parent=39 // pred_fallthru
          _
        // Predicated region
        $region45: #{_appearance_step.3} parent=39 // pred_check
          %p667 = pneg %p180
        $region46: #{_appearance_step.3} parent=39 // pred_check_branch
          %669 = sbr.rel (%p667) target = $region48
        $region47: #{_appearance_step.3} parent=39 // pred_region
          %s670 = smul.u32 4, %s21
        $region48: #{_appearance_step.3} parent=39 // pred_fallthru
          _
      $region40: #{_appearance_step.3} parent=5 // pred_fallthru
        _
      %p671 = scmp.le.s32.totalorder 2, %s16
      // Predicated region
      $region49: #{_appearance_step.3} parent=5 // pred_check
        %p672 = pneg %p671
      $region50: #{_appearance_step.3} parent=5 // pred_check_branch
        %674 = sbr.rel (%p672) target = $region52
      $region51: #{_appearance_step.3} parent=5 // pred_region
        %s675 = ssub.s32 %s16, 2
        // Predicated region
        $region53: #{_appearance_step.3} parent=51 // pred_check
          %p676 = pneg %p160
        $region54: #{_appearance_step.3} parent=51 // pred_check_branch
          %678 = sbr.rel (%p676) target = $region56
        $region55: #{_appearance_step.3} parent=51 // pred_region
          %s679 = sand.u32 %s145, 1
          %s680 = scalar_lea.sflag [#allocation3], %s679
          %s681 = sand.u32 %s145, 1
          %s682 = smul.addr %s681, 32
          %s683 = scalar_lea.vmem [#allocation2], %s682
          %684 = dma.done %s680, 512
        $region56: #{_appearance_step.3} parent=51 // pred_fallthru
          _
        // Predicated region
        $region57: #{_appearance_step.3} parent=51 // pred_check
          %p685 = pneg %p186
        $region58: #{_appearance_step.3} parent=51 // pred_check_branch
          %687 = sbr.rel (%p685) target = $region60
        $region59: #{_appearance_step.3} parent=51 // pred_region
          %s688 = smul.u32 4, %s22
          %p689 = scmp.lt.s32.totalorder %s688, 7
          %s690 = scalar_select %p689, %s688, 7
          %s691 = scalar_lea.vmem %s6, %s690
        $region60: #{_appearance_step.3} parent=51 // pred_fallthru
          _
      $region52: #{_appearance_step.3} parent=5 // pred_fallthru
        _
    $region6: #{_appearance_step.3} parent=1 // loop_footer
      %s20 = sadd.s32 1, %s16
    $region7: #{_appearance_step.3} parent=1 // loop_footer_branch
      %15 = sbr.rel target = $region3
    $region8: #{_appearance_step.3} parent=1 // loop_exit
      _
    %692 = vsyncpa [#allocation3], 1
    %s693 = scalar_lea.sflag [#allocation3], 1
    %694 = vsyncpa %s693, 1

</llo_original>
